<compile_context>
chip_gen: v7x
topology: tpu7x:2x2x1
jax: 0.10.0
libtpu: 0.0.40
codegen_flags: <defaults>
</compile_context>

<pallas_src>
import functools

import jax
import jax.numpy as jnp
from jax.experimental import pallas as pl
from jax.experimental.pallas import tpu as pltpu

EPS = 1e-12  # F.normalize clamp_min eps
TM = 128     # row tile along the node axis


def _round_up(v, m):
    return ((v + m - 1) // m) * m


def _encode_kernel(x_ref, ew1_ref, eb1_ref, ew2_ref, eb2_ref, w_ref,
                   hnorm_ref, hrelu_ref, k_ref, *, n_valid):
    tm = x_ref.shape[0]
    i = pl.program_id(0)
    row = i * tm + jax.lax.broadcasted_iota(jnp.int32, (tm, 1), 0)
    valid = row < n_valid  # mask padded node rows so they don't pollute attn

    x = x_ref[...]

    # encoder: Linear -> ReLU -> Linear  (bf16 MXU operands, f32 accumulate)
    h1 = jnp.dot(x.astype(jnp.bfloat16), ew1_ref[...],
                 preferred_element_type=jnp.float32) + eb1_ref[...]
    h1 = jnp.maximum(h1, 0.0)
    h = jnp.dot(h1.astype(jnp.bfloat16), ew2_ref[...],
                preferred_element_type=jnp.float32) + eb2_ref[...]

    # h_norm = F.normalize(h, p=2, dim=1)  (rsqrt on EUP, multiply on VPU)
    ss = jnp.sum(h * h, axis=1, keepdims=True)
    inv = jax.lax.rsqrt(jnp.maximum(ss, EPS * EPS))
    hnorm_ref[...] = jnp.where(valid, h * inv, 0.0)

    # h = relu(h); K = h @ W  (padded rows forced to zero)
    h_relu = jnp.where(valid, jnp.maximum(h, 0.0), 0.0)
    hrelu_ref[...] = h_relu.astype(jnp.bfloat16)
    k = jnp.dot(h_relu.astype(jnp.bfloat16), w_ref[...],
                preferred_element_type=jnp.float32)
    k_ref[...] = k.astype(jnp.bfloat16)


def _attn_decode_kernel(k_ref, hrelu_ref, dw1_ref, db1_ref, dw2_ref, db2_ref,
                        attn_ref, xpred_ref):
    k_tile = k_ref[...]        # (tm, L_pad) bf16
    h_all = hrelu_ref[...]     # (N_pad, L_pad) bf16, resident across grid

    # attn = K @ h_relu.T without materializing a transpose: contract axis 1 x axis 1.
    attn = jax.lax.dot_general(
        k_tile, h_all,
        dimension_numbers=(((1,), (1,)), ((), ())),
        preferred_element_type=jnp.float32)            # (tm, N_pad)

    # row-wise L2 normalize (F.normalize semantics) via rsqrt
    ss = jnp.sum(attn * attn, axis=1, keepdims=True)
    inv = jax.lax.rsqrt(jnp.maximum(ss, EPS * EPS))
    attn_ref[...] = attn * inv

    # decoder: Linear -> ReLU -> Linear, then sigmoid
    d1 = jnp.dot(k_tile, dw1_ref[...],
                 preferred_element_type=jnp.float32) + db1_ref[...]
    d1 = jnp.maximum(d1, 0.0)
    xp = jnp.dot(d1.astype(jnp.bfloat16), dw2_ref[...],
                 preferred_element_type=jnp.float32) + db2_ref[...]
    xpred_ref[...] = jax.nn.sigmoid(xp)


def graph_generator_forward(x, params, *, tm=TM):
    N, feat_dim = x.shape
    hidden_dim = params["e_b1"].shape[0]
    latent_dim = params["W"].shape[0]

    F_pad = _round_up(feat_dim, 128)
    H_pad = _round_up(hidden_dim, 128)
    L_pad = _round_up(latent_dim, 128)
    N_pad = _round_up(N, tm)
    grid = (N_pad // tm,)

    def pad2(a, r, c, dtype=jnp.bfloat16):
        a = jnp.pad(a, ((0, r - a.shape[0]), (0, c - a.shape[1])))
        return a.astype(dtype)

    def pad_bias(b, c):
        return jnp.pad(b, (0, c - b.shape[0])).reshape(1, c).astype(jnp.float32)

    x_p = pad2(x, N_pad, F_pad, jnp.float32)
    ew1 = pad2(params["e_w1"], F_pad, H_pad)
    eb1 = pad_bias(params["e_b1"], H_pad)
    ew2 = pad2(params["e_w2"], H_pad, L_pad)
    eb2 = pad_bias(params["e_b2"], L_pad)
    w_b = pad2(params["W"], L_pad, L_pad)
    dw1 = pad2(params["d_w1"], L_pad, H_pad)
    db1 = pad_bias(params["d_b1"], H_pad)
    dw2 = pad2(params["d_w2"], H_pad, F_pad)
    db2 = pad_bias(params["d_b2"], F_pad)

    cparams = pltpu.CompilerParams(
        dimension_semantics=("parallel",),
        vmem_limit_bytes=64 * 1024 * 1024,
    )
    row_map = lambda i: (i, 0)
    fixed_map = lambda i: (0, 0)

    # -------- kernel 1: encoder + h_norm + K --------
    enc = pl.pallas_call(
        functools.partial(_encode_kernel, n_valid=N),
        out_shape=(
            jax.ShapeDtypeStruct((N_pad, L_pad), jnp.float32),   # h_norm
            jax.ShapeDtypeStruct((N_pad, L_pad), jnp.bfloat16),  # h_relu
            jax.ShapeDtypeStruct((N_pad, L_pad), jnp.bfloat16),  # K
        ),
        grid=grid,
        in_specs=[
            pl.BlockSpec((tm, F_pad), row_map),
            pl.BlockSpec((F_pad, H_pad), fixed_map),
            pl.BlockSpec((1, H_pad), fixed_map),
            pl.BlockSpec((H_pad, L_pad), fixed_map),
            pl.BlockSpec((1, L_pad), fixed_map),
            pl.BlockSpec((L_pad, L_pad), fixed_map),
        ],
        out_specs=(
            pl.BlockSpec((tm, L_pad), row_map),
            pl.BlockSpec((tm, L_pad), row_map),
            pl.BlockSpec((tm, L_pad), row_map),
        ),
        compiler_params=cparams,
        cost_estimate=pl.CostEstimate(
            flops=int(2 * N_pad * (F_pad * H_pad + H_pad * L_pad + L_pad * L_pad)),
            transcendentals=int(N_pad),
            bytes_accessed=int(4 * N_pad * (F_pad + L_pad) + 2 * N_pad * 2 * L_pad),
        ),
    )
    h_norm_p, h_relu_p, k_p = enc(x_p, ew1, eb1, ew2, eb2, w_b)

    # -------- kernel 2: bilinear attention + decoder --------
    attn_dec = pl.pallas_call(
        _attn_decode_kernel,
        out_shape=(
            jax.ShapeDtypeStruct((N_pad, N_pad), jnp.float32),   # attn
            jax.ShapeDtypeStruct((N_pad, F_pad), jnp.float32),   # x_pred
        ),
        grid=grid,
        in_specs=[
            pl.BlockSpec((tm, L_pad), row_map),       # K row tile
            pl.BlockSpec((N_pad, L_pad), fixed_map),  # full h_relu, resident
            pl.BlockSpec((L_pad, H_pad), fixed_map),
            pl.BlockSpec((1, H_pad), fixed_map),
            pl.BlockSpec((H_pad, F_pad), fixed_map),
            pl.BlockSpec((1, F_pad), fixed_map),
        ],
        out_specs=(
            pl.BlockSpec((tm, N_pad), row_map),
            pl.BlockSpec((tm, F_pad), row_map),
        ),
        compiler_params=cparams,
        cost_estimate=pl.CostEstimate(
            flops=int(2 * N_pad * (N_pad * L_pad + L_pad * H_pad + H_pad * F_pad)),
            transcendentals=int(N_pad * (F_pad + 1)),
            bytes_accessed=int(4 * N_pad * N_pad + 4 * N_pad * F_pad
                               + 2 * N_pad * 2 * L_pad),
        ),
    )
    attn_p, xpred_p = attn_dec(k_p, h_relu_p, dw1, db1, dw2, db2)

    return (attn_p[:N, :N], xpred_p[:N, :feat_dim], h_norm_p[:N, :latent_dim])


def init_params(key, feat_dim, hidden_dim, latent_dim):
    """Deterministic parameter init mirroring the module shapes (W stored (in, out))."""
    ks = jax.random.split(key, 5)

    def xavier_normal(k, fan_in, fan_out):
        std = (2.0 / (fan_in + fan_out)) ** 0.5
        return std * jax.random.normal(k, (fan_in, fan_out), dtype=jnp.float32)

    return {
        # encoder MLP: feat -> hidden -> latent
        "e_w1": xavier_normal(ks[0], feat_dim, hidden_dim),
        "e_b1": jnp.zeros((hidden_dim,), jnp.float32),
        "e_w2": xavier_normal(ks[1], hidden_dim, latent_dim),
        "e_b2": jnp.zeros((latent_dim,), jnp.float32),
        # bilinear W (latent, latent), xavier_normal_
        "W": xavier_normal(ks[2], latent_dim, latent_dim),
        # decoder MLP: latent -> hidden -> feat
        "d_w1": xavier_normal(ks[3], latent_dim, hidden_dim),
        "d_b1": jnp.zeros((hidden_dim,), jnp.float32),
        "d_w2": xavier_normal(ks[4], hidden_dim, feat_dim),
        "d_b2": jnp.zeros((feat_dim,), jnp.float32),
    }


if __name__ == "__main__":
    N, feat_dim, hidden_dim, latent_dim = 8, 32, 32, 16

    key = jax.random.PRNGKey(0)
    kx, kp = jax.random.split(key)
    x = jax.random.normal(kx, (N, feat_dim), dtype=jnp.float32)
    params = init_params(kp, feat_dim, hidden_dim, latent_dim)

    attn, x_pred, h_norm = graph_generator_forward(x, params)
    jax.block_until_ready((attn, x_pred, h_norm))

    assert attn.shape == (N, N)
    assert x_pred.shape == (N, feat_dim)
    assert h_norm.shape == (N, latent_dim)
    assert bool(jnp.all(jnp.isfinite(attn)))
    assert bool(jnp.all((x_pred >= 0.0) & (x_pred <= 1.0)))
    print("KERNEL_OK")
</pallas_src>

<mosaic_0001>
module attributes {stable_mosaic.version = 11 : i64} {
  func.func @_encode_kernel(%arg0: i32, %arg1: memref<128x128xf32, #tpu.memory_space<vmem>>, %arg2: memref<128x128xbf16, #tpu.memory_space<vmem>>, %arg3: memref<1x128xf32, #tpu.memory_space<vmem>>, %arg4: memref<128x128xbf16, #tpu.memory_space<vmem>>, %arg5: memref<1x128xf32, #tpu.memory_space<vmem>>, %arg6: memref<128x128xbf16, #tpu.memory_space<vmem>>, %arg7: memref<128x128xf32, #tpu.memory_space<vmem>>, %arg8: memref<128x128xbf16, #tpu.memory_space<vmem>>, %arg9: memref<128x128xbf16, #tpu.memory_space<vmem>>) attributes {dimension_semantics = [#tpu.dimension_semantics<parallel>], iteration_bounds = array<i64: 1>, scalar_prefetch = 0 : i64, scratch_operands = 0 : i64, tpu.core_type = #tpu.core_type<tc>, window_params = [{transform_indices = @transform_0, window_bounds = array<i64: 128, 128>}, {pipeline_mode = #tpu.pipeline_mode<synchronous>, transform_indices = @transform_1, window_bounds = array<i64: 128, 128>}, {pipeline_mode = #tpu.pipeline_mode<synchronous>, transform_indices = @transform_2, window_bounds = array<i64: 1, 128>}, {pipeline_mode = #tpu.pipeline_mode<synchronous>, transform_indices = @transform_3, window_bounds = array<i64: 128, 128>}, {pipeline_mode = #tpu.pipeline_mode<synchronous>, transform_indices = @transform_4, window_bounds = array<i64: 1, 128>}, {pipeline_mode = #tpu.pipeline_mode<synchronous>, transform_indices = @transform_5, window_bounds = array<i64: 128, 128>}, {transform_indices = @transform_6, window_bounds = array<i64: 128, 128>}, {transform_indices = @transform_7, window_bounds = array<i64: 128, 128>}, {transform_indices = @transform_8, window_bounds = array<i64: 128, 128>}]} {
    %c128_i32 = arith.constant 128 : i32
    %0 = arith.muli %arg0, %c128_i32 : i32
    %1 = tpu.iota {dimensions = array<i32: 0>} : vector<128x1xi32>
    %2 = vector.broadcast %0 : i32 to vector<128x1xi32>
    %3 = arith.addi %2, %1 : vector<128x1xi32>
    %c8_i32 = arith.constant 8 : i32
    %4 = vector.broadcast %c8_i32 : i32 to vector<128x1xi32>
    %5 = arith.cmpi slt, %3, %4 : vector<128x1xi32>
    %c0 = arith.constant 0 : index
    %c0_0 = arith.constant 0 : index
    %6 = vector.load %arg1[%c0, %c0_0] : memref<128x128xf32, #tpu.memory_space<vmem>>, vector<128x128xf32>
    %7 = arith.truncf %6 : vector<128x128xf32> to vector<128x128xbf16>
    %c0_1 = arith.constant 0 : index
    %c0_2 = arith.constant 0 : index
    %8 = vector.load %arg2[%c0_1, %c0_2] : memref<128x128xbf16, #tpu.memory_space<vmem>>, vector<128x128xbf16>
    %cst = arith.constant dense<0.000000e+00> : vector<128x128xf32>
    %9 = tpu.matmul %7, %8, %cst {dimension_numbers = #tpu.dot_dimension_numbers<[1], [0], [0], [1], [0, 0, 1, 1], [], []>} : vector<128x128xbf16>, vector<128x128xbf16>, vector<128x128xf32> -> vector<128x128xf32>
    %c0_3 = arith.constant 0 : index
    %c0_4 = arith.constant 0 : index
    %10 = vector.load %arg3[%c0_3, %c0_4] : memref<1x128xf32, #tpu.memory_space<vmem>>, vector<1x128xf32>
    %11 = vector.broadcast %10 : vector<1x128xf32> to vector<128x128xf32>
    %12 = arith.addf %9, %11 : vector<128x128xf32>
    %cst_5 = arith.constant 0.000000e+00 : f32
    %13 = vector.broadcast %cst_5 : f32 to vector<128x128xf32>
    %14 = arith.maximumf %12, %13 : vector<128x128xf32>
    %15 = arith.truncf %14 : vector<128x128xf32> to vector<128x128xbf16>
    %c0_6 = arith.constant 0 : index
    %c0_7 = arith.constant 0 : index
    %16 = vector.load %arg4[%c0_6, %c0_7] : memref<128x128xbf16, #tpu.memory_space<vmem>>, vector<128x128xbf16>
    %cst_8 = arith.constant dense<0.000000e+00> : vector<128x128xf32>
    %17 = tpu.matmul %15, %16, %cst_8 {dimension_numbers = #tpu.dot_dimension_numbers<[1], [0], [0], [1], [0, 0, 1, 1], [], []>} : vector<128x128xbf16>, vector<128x128xbf16>, vector<128x128xf32> -> vector<128x128xf32>
    %c0_9 = arith.constant 0 : index
    %c0_10 = arith.constant 0 : index
    %18 = vector.load %arg5[%c0_9, %c0_10] : memref<1x128xf32, #tpu.memory_space<vmem>>, vector<1x128xf32>
    %19 = vector.broadcast %18 : vector<1x128xf32> to vector<128x128xf32>
    %20 = arith.addf %17, %19 : vector<128x128xf32>
    %21 = arith.mulf %20, %20 : vector<128x128xf32>
    %cst_11 = arith.constant dense<0.000000e+00> : vector<128xf32>
    %22 = vector.multi_reduction <add>, %21, %cst_11 [1] : vector<128x128xf32> to vector<128xf32>
    %23 = vector.shape_cast %22 : vector<128xf32> to vector<128x1xf32>
    %cst_12 = arith.constant 1.000000e-24 : f32
    %24 = vector.broadcast %cst_12 : f32 to vector<128x1xf32>
    %25 = arith.maximumf %23, %24 : vector<128x1xf32>
    %26 = math.rsqrt %25 : vector<128x1xf32>
    %27 = vector.broadcast %26 : vector<128x1xf32> to vector<128x128xf32>
    %28 = arith.mulf %20, %27 : vector<128x128xf32>
    %cst_13 = arith.constant 0.000000e+00 : f32
    %29 = vector.shape_cast %5 : vector<128x1xi1> to vector<128x1xi1>
    %30 = vector.broadcast %29 : vector<128x1xi1> to vector<128x128xi1>
    %31 = vector.broadcast %cst_13 : f32 to vector<128x128xf32>
    %32 = arith.select %30, %28, %31 : vector<128x128xi1>, vector<128x128xf32>
    %c0_14 = arith.constant 0 : index
    %c0_15 = arith.constant 0 : index
    %33 = vector.load %arg7[%c0_14, %c0_15] : memref<128x128xf32, #tpu.memory_space<vmem>>, vector<128x128xf32>
    tpu.vector_store %arg7[%c0_14, %c0_15], %32 {strides = array<i32>} : memref<128x128xf32, #tpu.memory_space<vmem>>, vector<128x128xf32>,
    %cst_16 = arith.constant 0.000000e+00 : f32
    %34 = vector.broadcast %cst_16 : f32 to vector<128x128xf32>
    %35 = arith.maximumf %20, %34 : vector<128x128xf32>
    %cst_17 = arith.constant 0.000000e+00 : f32
    %36 = vector.shape_cast %5 : vector<128x1xi1> to vector<128x1xi1>
    %37 = vector.broadcast %36 : vector<128x1xi1> to vector<128x128xi1>
    %38 = vector.broadcast %cst_17 : f32 to vector<128x128xf32>
    %39 = arith.select %37, %35, %38 : vector<128x128xi1>, vector<128x128xf32>
    %40 = arith.truncf %39 : vector<128x128xf32> to vector<128x128xbf16>
    %c0_18 = arith.constant 0 : index
    %c0_19 = arith.constant 0 : index
    %41 = vector.load %arg8[%c0_18, %c0_19] : memref<128x128xbf16, #tpu.memory_space<vmem>>, vector<128x128xbf16>
    tpu.vector_store %arg8[%c0_18, %c0_19], %40 {strides = array<i32>} : memref<128x128xbf16, #tpu.memory_space<vmem>>, vector<128x128xbf16>,
    %42 = arith.truncf %39 : vector<128x128xf32> to vector<128x128xbf16>
    %c0_20 = arith.constant 0 : index
    %c0_21 = arith.constant 0 : index
    %43 = vector.load %arg6[%c0_20, %c0_21] : memref<128x128xbf16, #tpu.memory_space<vmem>>, vector<128x128xbf16>
    %cst_22 = arith.constant dense<0.000000e+00> : vector<128x128xf32>
    %44 = tpu.matmul %42, %43, %cst_22 {dimension_numbers = #tpu.dot_dimension_numbers<[1], [0], [0], [1], [0, 0, 1, 1], [], []>} : vector<128x128xbf16>, vector<128x128xbf16>, vector<128x128xf32> -> vector<128x128xf32>
    %45 = arith.truncf %44 : vector<128x128xf32> to vector<128x128xbf16>
    %c0_23 = arith.constant 0 : index
    %c0_24 = arith.constant 0 : index
    %46 = vector.load %arg9[%c0_23, %c0_24] : memref<128x128xbf16, #tpu.memory_space<vmem>>, vector<128x128xbf16>
    tpu.vector_store %arg9[%c0_23, %c0_24], %45 {strides = array<i32>} : memref<128x128xbf16, #tpu.memory_space<vmem>>, vector<128x128xbf16>,
    return
  }
  func.func @transform_0(%arg0: i32) -> (i32, i32) {
    %c0_i32 = arith.constant 0 : i32
    %c0_i32_0 = arith.constant 0 : i32
    return %arg0, %c0_i32 : i32, i32
  }
  func.func @transform_1(%arg0: i32) -> (i32, i32) {
    %c0_i32 = arith.constant 0 : i32
    %c0_i32_0 = arith.constant 0 : i32
    %c0_i32_1 = arith.constant 0 : i32
    return %c0_i32, %c0_i32_0 : i32, i32
  }
  func.func @transform_2(%arg0: i32) -> (i32, i32) {
    %c0_i32 = arith.constant 0 : i32
    %c0_i32_0 = arith.constant 0 : i32
    %c0_i32_1 = arith.constant 0 : i32
    return %c0_i32, %c0_i32_0 : i32, i32
  }
  func.func @transform_3(%arg0: i32) -> (i32, i32) {
    %c0_i32 = arith.constant 0 : i32
    %c0_i32_0 = arith.constant 0 : i32
    %c0_i32_1 = arith.constant 0 : i32
    return %c0_i32, %c0_i32_0 : i32, i32
  }
  func.func @transform_4(%arg0: i32) -> (i32, i32) {
    %c0_i32 = arith.constant 0 : i32
    %c0_i32_0 = arith.constant 0 : i32
    %c0_i32_1 = arith.constant 0 : i32
    return %c0_i32, %c0_i32_0 : i32, i32
  }
  func.func @transform_5(%arg0: i32) -> (i32, i32) {
    %c0_i32 = arith.constant 0 : i32
    %c0_i32_0 = arith.constant 0 : i32
    %c0_i32_1 = arith.constant 0 : i32
    return %c0_i32, %c0_i32_0 : i32, i32
  }
  func.func @transform_6(%arg0: i32) -> (i32, i32) {
    %c0_i32 = arith.constant 0 : i32
    %c0_i32_0 = arith.constant 0 : i32
    return %arg0, %c0_i32 : i32, i32
  }
  func.func @transform_7(%arg0: i32) -> (i32, i32) {
    %c0_i32 = arith.constant 0 : i32
    %c0_i32_0 = arith.constant 0 : i32
    return %arg0, %c0_i32 : i32, i32
  }
  func.func @transform_8(%arg0: i32) -> (i32, i32) {
    %c0_i32 = arith.constant 0 : i32
    %c0_i32_0 = arith.constant 0 : i32
    return %arg0, %c0_i32 : i32, i32
  }
}

</mosaic_0001>

<llo_original>
// kernel: tpu_custom_call.1
$region0: #{tpu_custom_call.1}
  #allocation0 [shape = 'u32[]', space=smem, size = 0x4, offset = 0x4, fixed_abs, tag = 'smem constant byte address 0x4 - core index']
  #allocation1 [shape = 'u32[144,128]{1,0:T(1,128)}', space=vmem, size = 0x12000, scoped, tag = 'internal scratch']
  %s0 = inlined_call_operand.hbm [shape: f32[128,128], index: 0, kind: input, shape index: {}]
  %s1 = inlined_call_operand.hbm [shape: bf16[128,128], index: 1, kind: input, shape index: {}]
  %s2 = inlined_call_operand.hbm [shape: f32[1,128], index: 2, kind: input, shape index: {}]
  %s3 = inlined_call_operand.hbm [shape: bf16[128,128], index: 3, kind: input, shape index: {}]
  %s4 = inlined_call_operand.hbm [shape: f32[1,128], index: 4, kind: input, shape index: {}]
  %s5 = inlined_call_operand.hbm [shape: bf16[128,128], index: 5, kind: input, shape index: {}]
  %s6 = inlined_call_operand.hbm [shape: f32[128,128], index: 6, kind: output, shape index: {0}]
  %s7 = inlined_call_operand.hbm [shape: bf16[128,128], index: 7, kind: output, shape index: {1}]
  %s8 = inlined_call_operand.hbm [shape: bf16[128,128], index: 8, kind: output, shape index: {2}]
  %9 = xla_tuple %s6, %s7, %s8
  %s10 = sld [smem:[#allocation0]]
  $region74: #{tpu_custom_call.1} parent=0
    _
  %s12 = ssub.s32 1, %s10
  %s13 = scalar_select 0, %s12, %s10
  $region1: #{tpu_custom_call.1} parent=0
    #allocation2 [shape = 'u8[65536]{0}', space=vmem, size = 0x10000, scoped, tag = 'input window, operand 0, single buffered']
    #allocation3 [shape = 's32[1]{0}', space=sflag, size = 0x4, scoped, tag = 'scoped memory for tpu_custom_call.1']
    #allocation4 [shape = 's32[1]{0}', space=sflag, size = 0x4, scoped, tag = 'scoped memory for tpu_custom_call.1']
    #allocation5 [shape = 'u8[32768]{0}', space=vmem, size = 0x8000, scoped, tag = 'input window, operand 1, single buffered']
    #allocation6 [shape = 's32[1]{0}', space=sflag, size = 0x4, scoped, tag = 'scoped memory for tpu_custom_call.1']
    #allocation7 [shape = 'u8[512]{0}', space=vmem, size = 0x400, scoped, tag = 'input window, operand 2, single buffered']
    #allocation8 [shape = 'u8[32768]{0}', space=vmem, size = 0x8000, scoped, tag = 'input window, operand 3, single buffered']
    #allocation9 [shape = 's32[1]{0}', space=sflag, size = 0x4, scoped, tag = 'scoped memory for tpu_custom_call.1']
    #allocation10 [shape = 'u8[512]{0}', space=vmem, size = 0x400, scoped, tag = 'input window, operand 4, single buffered']
    #allocation11 [shape = 'u8[32768]{0}', space=vmem, size = 0x8000, scoped, tag = 'input window, operand 5, single buffered']
    #allocation12 [shape = 's32[1]{0}', space=sflag, size = 0x4, scoped, tag = 'scoped memory for tpu_custom_call.1']
    #allocation13 [shape = 'u8[65536]{0}', space=vmem, size = 0x10000, scoped, tag = 'output window, operand 0, single buffered']
    #allocation14 [shape = 'u8[32768]{0}', space=vmem, size = 0x8000, scoped, tag = 'output window, operand 1, single buffered']
    #allocation15 [shape = 's32[1]{0}', space=sflag, size = 0x4, scoped, tag = 'scoped memory for tpu_custom_call.1']
    #allocation16 [shape = 'u8[32768]{0}', space=vmem, size = 0x8000, scoped, tag = 'output window, operand 2, single buffered']
    %14 = vsyncpa [#allocation3], 0
    %15 = vsyncpa [#allocation6], 0
    %16 = vsyncpa [#allocation9], 0
    %17 = vsyncpa [#allocation12], 0
    %18 = vsyncpa [#allocation4], 0
    %19 = vsyncpa [#allocation15], 0
    // Predicated region
    $region2: #{tpu_custom_call.1} parent=1 // pred_check
      _
    $region3: #{tpu_custom_call.1} parent=1 // pred_check_branch
      %21 = sbr.rel (0) target = $region5
    $region4: #{tpu_custom_call.1} parent=1 // pred_region
      %s23 = ssub.s32 2048, 2048
      %24 = vsyncadd [#allocation3], %s23
      %s25 = sshll.u32 [#allocation2], 4
      %s26 = int_to_ptr.vmem [resolvable:$true] %s25
      %31 = dma.hbm_to_vmem [thread:$0]  %s0, 2048, %s26, [#allocation3], 128, 128, 8
    $region5: #{tpu_custom_call.1} parent=1 // pred_fallthru
      _
    // Predicated region
    $region6: #{tpu_custom_call.1} parent=1 // pred_check
      _
    $region7: #{tpu_custom_call.1} parent=1 // pred_check_branch
      %33 = sbr.rel (0) target = $region9
    $region8: #{tpu_custom_call.1} parent=1 // pred_region
      %s35 = ssub.s32 1024, 1024
      %36 = vsyncadd [#allocation6], %s35
      %s37 = sshll.u32 [#allocation5], 4
      %s38 = int_to_ptr.vmem [resolvable:$true] %s37
      %43 = dma.hbm_to_vmem [thread:$0]  %s1, 1024, %s38, [#allocation6], 64, 64, 4
    $region9: #{tpu_custom_call.1} parent=1 // pred_fallthru
      _
    // Predicated region
    $region10: #{tpu_custom_call.1} parent=1 // pred_check
      _
    $region11: #{tpu_custom_call.1} parent=1 // pred_check_branch
      %45 = sbr.rel (0) target = $region13
    $region12: #{tpu_custom_call.1} parent=1 // pred_region
      %s47 = ssub.s32 16, 16
      %48 = vsyncadd [#allocation6], %s47
      %s50 = sshll.u32 [#allocation7], 4
      %s51 = int_to_ptr.vmem [resolvable:$true] %s50
      %53 = dma.hbm_to_vmem [thread:$0]  %s2, 16, %s51, [#allocation6]
    $region13: #{tpu_custom_call.1} parent=1 // pred_fallthru
      _
    // Predicated region
    $region14: #{tpu_custom_call.1} parent=1 // pred_check
      _
    $region15: #{tpu_custom_call.1} parent=1 // pred_check_branch
      %55 = sbr.rel (0) target = $region17
    $region16: #{tpu_custom_call.1} parent=1 // pred_region
      %s57 = ssub.s32 1024, 1024
      %58 = vsyncadd [#allocation9], %s57
      %s59 = sshll.u32 [#allocation8], 4
      %s60 = int_to_ptr.vmem [resolvable:$true] %s59
      %65 = dma.hbm_to_vmem [thread:$0]  %s3, 1024, %s60, [#allocation9], 64, 64, 4
    $region17: #{tpu_custom_call.1} parent=1 // pred_fallthru
      _
    // Predicated region
    $region18: #{tpu_custom_call.1} parent=1 // pred_check
      _
    $region19: #{tpu_custom_call.1} parent=1 // pred_check_branch
      %67 = sbr.rel (0) target = $region21
    $region20: #{tpu_custom_call.1} parent=1 // pred_region
      %s69 = ssub.s32 16, 16
      %70 = vsyncadd [#allocation9], %s69
      %s72 = sshll.u32 [#allocation10], 4
      %s73 = int_to_ptr.vmem [resolvable:$true] %s72
      %75 = dma.hbm_to_vmem [thread:$0]  %s4, 16, %s73, [#allocation9]
    $region21: #{tpu_custom_call.1} parent=1 // pred_fallthru
      _
    // Predicated region
    $region22: #{tpu_custom_call.1} parent=1 // pred_check
      _
    $region23: #{tpu_custom_call.1} parent=1 // pred_check_branch
      %77 = sbr.rel (0) target = $region25
    $region24: #{tpu_custom_call.1} parent=1 // pred_region
      %s79 = ssub.s32 1024, 1024
      %80 = vsyncadd [#allocation12], %s79
      %s81 = sshll.u32 [#allocation11], 4
      %s82 = int_to_ptr.vmem [resolvable:$true] %s81
      %87 = dma.hbm_to_vmem [thread:$0]  %s5, 1024, %s82, [#allocation12], 64, 64, 4
    $region25: #{tpu_custom_call.1} parent=1 // pred_fallthru
      _
    // Predicated region
    $region26: #{tpu_custom_call.1} parent=1 // pred_check
      _
    $region27: #{tpu_custom_call.1} parent=1 // pred_check_branch
      %89 = sbr.rel (0) target = $region29
    $region28: #{tpu_custom_call.1} parent=1 // pred_region
      %90 = dma.done [#allocation3], 2048
    $region29: #{tpu_custom_call.1} parent=1 // pred_fallthru
      _
    // Predicated region
    $region30: #{tpu_custom_call.1} parent=1 // pred_check
      _
    $region31: #{tpu_custom_call.1} parent=1 // pred_check_branch
      %92 = sbr.rel (0) target = $region33
    $region32: #{tpu_custom_call.1} parent=1 // pred_region
      %93 = dma.done [#allocation6], 1024
    $region33: #{tpu_custom_call.1} parent=1 // pred_fallthru
      _
    // Predicated region
    $region34: #{tpu_custom_call.1} parent=1 // pred_check
      _
    $region35: #{tpu_custom_call.1} parent=1 // pred_check_branch
      %95 = sbr.rel (0) target = $region37
    $region36: #{tpu_custom_call.1} parent=1 // pred_region
      %96 = dma.done [#allocation6], 16
    $region37: #{tpu_custom_call.1} parent=1 // pred_fallthru
      _
    // Predicated region
    $region38: #{tpu_custom_call.1} parent=1 // pred_check
      _
    $region39: #{tpu_custom_call.1} parent=1 // pred_check_branch
      %98 = sbr.rel (0) target = $region41
    $region40: #{tpu_custom_call.1} parent=1 // pred_region
      %99 = dma.done [#allocation9], 1024
    $region41: #{tpu_custom_call.1} parent=1 // pred_fallthru
      _
    // Predicated region
    $region42: #{tpu_custom_call.1} parent=1 // pred_check
      _
    $region43: #{tpu_custom_call.1} parent=1 // pred_check_branch
      %101 = sbr.rel (0) target = $region45
    $region44: #{tpu_custom_call.1} parent=1 // pred_region
      %102 = dma.done [#allocation9], 16
    $region45: #{tpu_custom_call.1} parent=1 // pred_fallthru
      _
    // Predicated region
    $region46: #{tpu_custom_call.1} parent=1 // pred_check
      _
    $region47: #{tpu_custom_call.1} parent=1 // pred_check_branch
      %104 = sbr.rel (0) target = $region49
    $region48: #{tpu_custom_call.1} parent=1 // pred_region
      %105 = dma.done [#allocation12], 1024
    $region49: #{tpu_custom_call.1} parent=1 // pred_fallthru
      _
    %s107 = smul.u32 0, 128
    %v108 = vlaneseq
    %v109 = vshrl.u32 %v108, 7
    %v110 = vadd.s32 %v109, 8
    %v111 = vadd.s32 %v109, 16
    %v112 = vadd.s32 %v109, 24
    %v113 = vadd.s32 %v109, 32
    %v114 = vadd.s32 %v109, 40
    %v115 = vadd.s32 %v109, 48
    %v116 = vadd.s32 %v109, 56
    %v117 = vadd.s32 %v109, 64
    %v118 = vadd.s32 %v109, 72
    %v119 = vadd.s32 %v109, 80
    %v120 = vadd.s32 %v109, 88
    %v121 = vadd.s32 %v109, 96
    %v122 = vadd.s32 %v109, 104
    %v123 = vadd.s32 %v109, 112
    %v124 = vadd.s32 %v109, 120
    %v125 = vstv %s107
    %v126 = vadd.s32 %v125, %v109
    %v127 = vadd.s32 %v125, %v110
    %v128 = vadd.s32 %v125, %v111
    %v129 = vadd.s32 %v125, %v112
    %v130 = vadd.s32 %v125, %v113
    %v131 = vadd.s32 %v125, %v114
    %v132 = vadd.s32 %v125, %v115
    %v133 = vadd.s32 %v125, %v116
    %v134 = vadd.s32 %v125, %v117
    %v135 = vadd.s32 %v125, %v118
    %v136 = vadd.s32 %v125, %v119
    %v137 = vadd.s32 %v125, %v120
    %v138 = vadd.s32 %v125, %v121
    %v139 = vadd.s32 %v125, %v122
    %v140 = vadd.s32 %v125, %v123
    %v141 = vadd.s32 %v125, %v124
    %vm142 = vcmp.lt.s32.totalorder %v126, 8
    %vm143 = vcmp.lt.s32.totalorder %v127, 8
    %vm144 = vcmp.lt.s32.totalorder %v128, 8
    %vm145 = vcmp.lt.s32.totalorder %v129, 8
    %vm146 = vcmp.lt.s32.totalorder %v130, 8
    %vm147 = vcmp.lt.s32.totalorder %v131, 8
    %vm148 = vcmp.lt.s32.totalorder %v132, 8
    %vm149 = vcmp.lt.s32.totalorder %v133, 8
    %vm150 = vcmp.lt.s32.totalorder %v134, 8
    %vm151 = vcmp.lt.s32.totalorder %v135, 8
    %vm152 = vcmp.lt.s32.totalorder %v136, 8
    %vm153 = vcmp.lt.s32.totalorder %v137, 8
    %vm154 = vcmp.lt.s32.totalorder %v138, 8
    %vm155 = vcmp.lt.s32.totalorder %v139, 8
    %vm156 = vcmp.lt.s32.totalorder %v140, 8
    %vm157 = vcmp.lt.s32.totalorder %v141, 8
    %v158 = vld [vmem:[#allocation2] sm:$0xff]
    %v159 = vld [vmem:[#allocation2 + $0x8] sm:$0xff]
    %v160 = vld [vmem:[#allocation2 + $0x10] sm:$0xff]
    %v161 = vld [vmem:[#allocation2 + $0x18] sm:$0xff]
    %v162 = vld [vmem:[#allocation2 + $0x20] sm:$0xff]
    %v163 = vld [vmem:[#allocation2 + $0x28] sm:$0xff]
    %v164 = vld [vmem:[#allocation2 + $0x30] sm:$0xff]
    %v165 = vld [vmem:[#allocation2 + $0x38] sm:$0xff]
    %v166 = vld [vmem:[#allocation2 + $0x40] sm:$0xff]
    %v167 = vld [vmem:[#allocation2 + $0x48] sm:$0xff]
    %v168 = vld [vmem:[#allocation2 + $0x50] sm:$0xff]
    %v169 = vld [vmem:[#allocation2 + $0x58] sm:$0xff]
    %v170 = vld [vmem:[#allocation2 + $0x60] sm:$0xff]
    %v171 = vld [vmem:[#allocation2 + $0x68] sm:$0xff]
    %v172 = vld [vmem:[#allocation2 + $0x70] sm:$0xff]
    %v173 = vld [vmem:[#allocation2 + $0x78] sm:$0xff]
    %v174 = vpack.c.bf16 %v159, %v158
    %v175 = vpack.c.bf16 %v161, %v160
    %v176 = vpack.c.bf16 %v163, %v162
    %v177 = vpack.c.bf16 %v165, %v164
    %v178 = vpack.c.bf16 %v167, %v166
    %v179 = vpack.c.bf16 %v169, %v168
    %v180 = vpack.c.bf16 %v171, %v170
    %v181 = vpack.c.bf16 %v173, %v172
    %v182 = vld [vmem:[#allocation5] sm:$0xf]
    %v183 = vld [vmem:[#allocation5 + $0x4] sm:$0xf]
    %v184 = vld [vmem:[#allocation5 + $0x8] sm:$0xf]
    %v185 = vld [vmem:[#allocation5 + $0xc] sm:$0xf]
    %v186 = vld [vmem:[#allocation5 + $0x10] sm:$0xf]
    %v187 = vld [vmem:[#allocation5 + $0x14] sm:$0xf]
    %v188 = vld [vmem:[#allocation5 + $0x18] sm:$0xf]
    %v189 = vld [vmem:[#allocation5 + $0x1c] sm:$0xf]
    %v190 = vld [vmem:[#allocation5 + $0x20] sm:$0xf]
    %v191 = vld [vmem:[#allocation5 + $0x24] sm:$0xf]
    %v192 = vld [vmem:[#allocation5 + $0x28] sm:$0xf]
    %v193 = vld [vmem:[#allocation5 + $0x2c] sm:$0xf]
    %v194 = vld [vmem:[#allocation5 + $0x30] sm:$0xf]
    %v195 = vld [vmem:[#allocation5 + $0x34] sm:$0xf]
    %v196 = vld [vmem:[#allocation5 + $0x38] sm:$0xf]
    %v197 = vld [vmem:[#allocation5 + $0x3c] sm:$0xf]
    %v198 = vld [vmem:[#allocation7] sm:$0x1]
    %v200 = vlaneseq
    %v201 = vshrl.u32 %v200, 7
    %v202 = vsub.s32 0, %v201
    %v203 = vrot.slane %v198, %v202
    %v221 = vunpack.c.l.b16 %v182
    %v222 = vunpack.c.l.b16 %v183
    %v223 = vunpack.c.l.b16 %v184
    %v224 = vunpack.c.l.b16 %v185
    %v225 = vunpack.c.l.b16 %v186
    %v226 = vunpack.c.l.b16 %v187
    %v227 = vunpack.c.l.b16 %v188
    %v228 = vunpack.c.l.b16 %v189
    %v229 = vunpack.c.l.b16 %v190
    %v230 = vunpack.c.l.b16 %v191
    %v231 = vunpack.c.l.b16 %v192
    %v232 = vunpack.c.l.b16 %v193
    %v233 = vunpack.c.l.b16 %v194
    %v234 = vunpack.c.l.b16 %v195
    %v235 = vunpack.c.l.b16 %v196
    %v236 = vunpack.c.l.b16 %v197
    %v237 = vpack.c.b16 %v222, %v221
    %v238 = vpack.c.b16 %v224, %v223
    %v239 = vpack.c.b16 %v226, %v225
    %v240 = vpack.c.b16 %v228, %v227
    %v241 = vpack.c.b16 %v230, %v229
    %v242 = vpack.c.b16 %v232, %v231
    %v243 = vpack.c.b16 %v234, %v233
    %v244 = vpack.c.b16 %v236, %v235
    %253 = vmatprep.subr.bf16.mxu0 0
    %254 = vmatpush1.bf16.msra.mxu0 %v237
    %255 = vmatprep.subr.bf16.mxu0 0
    %256 = vmatpush1.bf16.msra.mxu0 %v238
    %257 = vmatprep.subr.bf16.mxu0 0
    %258 = vmatpush1.bf16.msra.mxu0 %v239
    %259 = vmatprep.subr.bf16.mxu0 0
    %260 = vmatpush1.bf16.msra.mxu0 %v240
    %261 = vmatprep.subr.bf16.mxu0 0
    %262 = vmatpush1.bf16.msra.mxu0 %v241
    %263 = vmatprep.subr.bf16.mxu0 0
    %264 = vmatpush1.bf16.msra.mxu0 %v242
    %265 = vmatprep.subr.bf16.mxu0 0
    %266 = vmatpush1.bf16.msra.mxu0 %v243
    %267 = vmatprep.subr.bf16.mxu0 0
    %268 = vmatpush1.bf16.msra.mxu0 %v244
    %269 = vmatprep.subr.bf16.mxu0 0
    %270 = vmatpush1.bf16.msra.mxu0 0
    %271 = vmatprep.subr.bf16.mxu0 0
    %272 = vmatpush1.bf16.msra.mxu0 0
    %273 = vmatprep.subr.bf16.mxu0 0
    %274 = vmatpush1.bf16.msra.mxu0 0
    %275 = vmatprep.subr.bf16.mxu0 0
    %276 = vmatpush1.bf16.msra.mxu0 0
    %277 = vmatprep.subr.bf16.mxu0 0
    %278 = vmatpush1.bf16.msra.mxu0 0
    %279 = vmatprep.subr.bf16.mxu0 0
    %280 = vmatpush1.bf16.msra.mxu0 0
    %281 = vmatprep.subr.bf16.mxu0 0
    %282 = vmatpush1.bf16.msra.mxu0 0
    %283 = vmatprep.subr.bf16.mxu0 0
    %284 = vmatpush1.bf16.msra.mxu0 0
    %285 = vmatprep.mubr.bf16.mxu0 0
    %286 = vmatmul.mubr.bf16.gmra.mrb[0].mxu0 %v174
    %v287 = vpop.f32.mrb[0].mxu0
    %v288 = vadd.f32 %v203, %v287
    %v289 = vpop.f32.mrb[0].mxu0
    %v290 = vpop.f32.mrb[0].mxu0
    %v291 = vadd.f32 %v203, %v290
    %v292 = vpop.f32.mrb[0].mxu0
    %293 = vmatprep.mubr.bf16.mxu0 0
    %294 = vmatmul.mubr.bf16.gmra.mrb[0].mxu0 %v175
    %v295 = vpop.f32.mrb[0].mxu0
    %v296 = vadd.f32 %v203, %v295
    %v297 = vpop.f32.mrb[0].mxu0
    %v298 = vpop.f32.mrb[0].mxu0
    %v299 = vadd.f32 %v203, %v298
    %v300 = vpop.f32.mrb[0].mxu0
    %301 = vmatprep.mubr.bf16.mxu0 0
    %302 = vmatmul.mubr.bf16.gmra.mrb[0].mxu0 %v176
    %v303 = vpop.f32.mrb[0].mxu0
    %v304 = vadd.f32 %v203, %v303
    %v305 = vpop.f32.mrb[0].mxu0
    %v306 = vpop.f32.mrb[0].mxu0
    %v307 = vadd.f32 %v203, %v306
    %v308 = vpop.f32.mrb[0].mxu0
    %309 = vmatprep.mubr.bf16.mxu0 0
    %310 = vmatmul.mubr.bf16.gmra.mrb[0].mxu0 %v177
    %v311 = vpop.f32.mrb[0].mxu0
    %v312 = vadd.f32 %v203, %v311
    %v313 = vpop.f32.mrb[0].mxu0
    %v314 = vpop.f32.mrb[0].mxu0
    %v315 = vadd.f32 %v203, %v314
    %v316 = vpop.f32.mrb[0].mxu0
    %317 = vmatprep.mubr.bf16.mxu0 0
    %318 = vmatmul.mubr.bf16.gmra.mrb[0].mxu0 %v178
    %v319 = vpop.f32.mrb[0].mxu0
    %v320 = vadd.f32 %v203, %v319
    %v321 = vpop.f32.mrb[0].mxu0
    %v322 = vpop.f32.mrb[0].mxu0
    %v323 = vadd.f32 %v203, %v322
    %v324 = vpop.f32.mrb[0].mxu0
    %325 = vmatprep.mubr.bf16.mxu0 0
    %326 = vmatmul.mubr.bf16.gmra.mrb[0].mxu0 %v179
    %v327 = vpop.f32.mrb[0].mxu0
    %v328 = vadd.f32 %v203, %v327
    %v329 = vpop.f32.mrb[0].mxu0
    %v330 = vpop.f32.mrb[0].mxu0
    %v331 = vadd.f32 %v203, %v330
    %v332 = vpop.f32.mrb[0].mxu0
    %333 = vmatprep.mubr.bf16.mxu0 0
    %334 = vmatmul.mubr.bf16.gmra.mrb[0].mxu0 %v180
    %v335 = vpop.f32.mrb[0].mxu0
    %v336 = vadd.f32 %v203, %v335
    %v337 = vpop.f32.mrb[0].mxu0
    %v338 = vpop.f32.mrb[0].mxu0
    %v339 = vadd.f32 %v203, %v338
    %v340 = vpop.f32.mrb[0].mxu0
    %341 = vmatprep.mubr.bf16.mxu0 0
    %342 = vmatmul.mubr.bf16.gmra.mrb[0].mxu0 %v181
    %v343 = vpop.f32.mrb[0].mxu0
    %v344 = vadd.f32 %v203, %v343
    %v345 = vpop.f32.mrb[0].mxu0
    %v346 = vpop.f32.mrb[0].mxu0
    %v347 = vadd.f32 %v203, %v346
    %v348 = vpop.f32.mrb[0].mxu0
    %349 = vdwg.mxu0
    %v350 = vmax.f32 %v288, 0.0
    %v351 = vmax.f32 %v291, 0.0
    %v352 = vmax.f32 %v296, 0.0
    %v353 = vmax.f32 %v299, 0.0
    %v354 = vmax.f32 %v304, 0.0
    %v355 = vmax.f32 %v307, 0.0
    %v356 = vmax.f32 %v312, 0.0
    %v357 = vmax.f32 %v315, 0.0
    %v358 = vmax.f32 %v320, 0.0
    %v359 = vmax.f32 %v323, 0.0
    %v360 = vmax.f32 %v328, 0.0
    %v361 = vmax.f32 %v331, 0.0
    %v362 = vmax.f32 %v336, 0.0
    %v363 = vmax.f32 %v339, 0.0
    %v364 = vmax.f32 %v344, 0.0
    %v365 = vmax.f32 %v347, 0.0
    %v366 = vpack.c.bf16 %v351, %v350
    %v367 = vpack.c.bf16 %v353, %v352
    %v368 = vpack.c.bf16 %v355, %v354
    %v369 = vpack.c.bf16 %v357, %v356
    %v370 = vpack.c.bf16 %v359, %v358
    %v371 = vpack.c.bf16 %v361, %v360
    %v372 = vpack.c.bf16 %v363, %v362
    %v373 = vpack.c.bf16 %v365, %v364
    %v374 = vld [vmem:[#allocation8] sm:$0xf]
    %v375 = vld [vmem:[#allocation8 + $0x4] sm:$0xf]
    %v376 = vld [vmem:[#allocation8 + $0x8] sm:$0xf]
    %v377 = vld [vmem:[#allocation8 + $0xc] sm:$0xf]
    %v378 = vld [vmem:[#allocation8 + $0x10] sm:$0xf]
    %v379 = vld [vmem:[#allocation8 + $0x14] sm:$0xf]
    %v380 = vld [vmem:[#allocation8 + $0x18] sm:$0xf]
    %v381 = vld [vmem:[#allocation8 + $0x1c] sm:$0xf]
    %v382 = vld [vmem:[#allocation8 + $0x20] sm:$0xf]
    %v383 = vld [vmem:[#allocation8 + $0x24] sm:$0xf]
    %v384 = vld [vmem:[#allocation8 + $0x28] sm:$0xf]
    %v385 = vld [vmem:[#allocation8 + $0x2c] sm:$0xf]
    %v386 = vld [vmem:[#allocation8 + $0x30] sm:$0xf]
    %v387 = vld [vmem:[#allocation8 + $0x34] sm:$0xf]
    %v388 = vld [vmem:[#allocation8 + $0x38] sm:$0xf]
    %v389 = vld [vmem:[#allocation8 + $0x3c] sm:$0xf]
    %v390 = vld [vmem:[#allocation10] sm:$0x1]
    %v392 = vlaneseq
    %v393 = vshrl.u32 %v392, 7
    %v394 = vsub.s32 0, %v393
    %v395 = vrot.slane %v390, %v394
    %v413 = vunpack.c.l.b16 %v374
    %v414 = vunpack.c.l.b16 %v375
    %v415 = vunpack.c.l.b16 %v376
    %v416 = vunpack.c.l.b16 %v377
    %v417 = vunpack.c.l.b16 %v378
    %v418 = vunpack.c.l.b16 %v379
    %v419 = vunpack.c.l.b16 %v380
    %v420 = vunpack.c.l.b16 %v381
    %v421 = vunpack.c.l.b16 %v382
    %v422 = vunpack.c.l.b16 %v383
    %v423 = vunpack.c.l.b16 %v384
    %v424 = vunpack.c.l.b16 %v385
    %v425 = vunpack.c.l.b16 %v386
    %v426 = vunpack.c.l.b16 %v387
    %v427 = vunpack.c.l.b16 %v388
    %v428 = vunpack.c.l.b16 %v389
    %v429 = vpack.c.b16 %v414, %v413
    %v430 = vpack.c.b16 %v416, %v415
    %v431 = vpack.c.b16 %v418, %v417
    %v432 = vpack.c.b16 %v420, %v419
    %v433 = vpack.c.b16 %v422, %v421
    %v434 = vpack.c.b16 %v424, %v423
    %v435 = vpack.c.b16 %v426, %v425
    %v436 = vpack.c.b16 %v428, %v427
    %445 = vmatprep.subr.bf16.mxu0 0
    %446 = vmatpush1.bf16.msra.mxu0 %v429
    %447 = vmatprep.subr.bf16.mxu0 0
    %448 = vmatpush1.bf16.msra.mxu0 %v430
    %449 = vmatprep.subr.bf16.mxu0 0
    %450 = vmatpush1.bf16.msra.mxu0 %v431
    %451 = vmatprep.subr.bf16.mxu0 0
    %452 = vmatpush1.bf16.msra.mxu0 %v432
    %453 = vmatprep.subr.bf16.mxu0 0
    %454 = vmatpush1.bf16.msra.mxu0 %v433
    %455 = vmatprep.subr.bf16.mxu0 0
    %456 = vmatpush1.bf16.msra.mxu0 %v434
    %457 = vmatprep.subr.bf16.mxu0 0
    %458 = vmatpush1.bf16.msra.mxu0 %v435
    %459 = vmatprep.subr.bf16.mxu0 0
    %460 = vmatpush1.bf16.msra.mxu0 %v436
    %461 = vmatprep.subr.bf16.mxu0 0
    %462 = vmatpush1.bf16.msra.mxu0 0
    %463 = vmatprep.subr.bf16.mxu0 0
    %464 = vmatpush1.bf16.msra.mxu0 0
    %465 = vmatprep.subr.bf16.mxu0 0
    %466 = vmatpush1.bf16.msra.mxu0 0
    %467 = vmatprep.subr.bf16.mxu0 0
    %468 = vmatpush1.bf16.msra.mxu0 0
    %469 = vmatprep.subr.bf16.mxu0 0
    %470 = vmatpush1.bf16.msra.mxu0 0
    %471 = vmatprep.subr.bf16.mxu0 0
    %472 = vmatpush1.bf16.msra.mxu0 0
    %473 = vmatprep.subr.bf16.mxu0 0
    %474 = vmatpush1.bf16.msra.mxu0 0
    %475 = vmatprep.subr.bf16.mxu0 0
    %476 = vmatpush1.bf16.msra.mxu0 0
    %477 = vmatprep.mubr.bf16.mxu0 0
    %478 = vmatmul.mubr.bf16.gmra.mrb[0].mxu0 %v366
    %v479 = vpop.f32.mrb[0].mxu0
    %v480 = vadd.f32 %v395, %v479
    %v481 = vpop.f32.mrb[0].mxu0
    %v482 = vpop.f32.mrb[0].mxu0
    %v483 = vadd.f32 %v395, %v482
    %v484 = vpop.f32.mrb[0].mxu0
    %485 = vmatprep.mubr.bf16.mxu0 0
    %486 = vmatmul.mubr.bf16.gmra.mrb[0].mxu0 %v367
    %v487 = vpop.f32.mrb[0].mxu0
    %v488 = vadd.f32 %v395, %v487
    %v489 = vpop.f32.mrb[0].mxu0
    %v490 = vpop.f32.mrb[0].mxu0
    %v491 = vadd.f32 %v395, %v490
    %v492 = vpop.f32.mrb[0].mxu0
    %493 = vmatprep.mubr.bf16.mxu0 0
    %494 = vmatmul.mubr.bf16.gmra.mrb[0].mxu0 %v368
    %v495 = vpop.f32.mrb[0].mxu0
    %v496 = vadd.f32 %v395, %v495
    %v497 = vpop.f32.mrb[0].mxu0
    %v498 = vpop.f32.mrb[0].mxu0
    %v499 = vadd.f32 %v395, %v498
    %v500 = vpop.f32.mrb[0].mxu0
    %501 = vmatprep.mubr.bf16.mxu0 0
    %502 = vmatmul.mubr.bf16.gmra.mrb[0].mxu0 %v369
    %v503 = vpop.f32.mrb[0].mxu0
    %v504 = vadd.f32 %v395, %v503
    %v505 = vpop.f32.mrb[0].mxu0
    %v506 = vpop.f32.mrb[0].mxu0
    %v507 = vadd.f32 %v395, %v506
    %v508 = vpop.f32.mrb[0].mxu0
    %509 = vmatprep.mubr.bf16.mxu0 0
    %510 = vmatmul.mubr.bf16.gmra.mrb[0].mxu0 %v370
    %v511 = vpop.f32.mrb[0].mxu0
    %v512 = vadd.f32 %v395, %v511
    %v513 = vpop.f32.mrb[0].mxu0
    %v514 = vpop.f32.mrb[0].mxu0
    %v515 = vadd.f32 %v395, %v514
    %v516 = vpop.f32.mrb[0].mxu0
    %517 = vmatprep.mubr.bf16.mxu0 0
    %518 = vmatmul.mubr.bf16.gmra.mrb[0].mxu0 %v371
    %v519 = vpop.f32.mrb[0].mxu0
    %v520 = vadd.f32 %v395, %v519
    %v521 = vpop.f32.mrb[0].mxu0
    %v522 = vpop.f32.mrb[0].mxu0
    %v523 = vadd.f32 %v395, %v522
    %v524 = vpop.f32.mrb[0].mxu0
    %525 = vmatprep.mubr.bf16.mxu0 0
    %526 = vmatmul.mubr.bf16.gmra.mrb[0].mxu0 %v372
    %v527 = vpop.f32.mrb[0].mxu0
    %v528 = vadd.f32 %v395, %v527
    %v529 = vpop.f32.mrb[0].mxu0
    %v530 = vpop.f32.mrb[0].mxu0
    %v531 = vadd.f32 %v395, %v530
    %v532 = vpop.f32.mrb[0].mxu0
    %533 = vmatprep.mubr.bf16.mxu0 0
    %534 = vmatmul.mubr.bf16.gmra.mrb[0].mxu0 %v373
    %v535 = vpop.f32.mrb[0].mxu0
    %v536 = vadd.f32 %v395, %v535
    %v537 = vpop.f32.mrb[0].mxu0
    %v538 = vpop.f32.mrb[0].mxu0
    %v539 = vadd.f32 %v395, %v538
    %v540 = vpop.f32.mrb[0].mxu0
    %541 = vdwg.mxu0
    %v542 = vmul.f32 %v480, %v480
    %v543 = vmul.f32 %v483, %v483
    %v544 = vmul.f32 %v488, %v488
    %v545 = vmul.f32 %v491, %v491
    %v546 = vmul.f32 %v496, %v496
    %v547 = vmul.f32 %v499, %v499
    %v548 = vmul.f32 %v504, %v504
    %v549 = vmul.f32 %v507, %v507
    %v550 = vmul.f32 %v512, %v512
    %v551 = vmul.f32 %v515, %v515
    %v552 = vmul.f32 %v520, %v520
    %v553 = vmul.f32 %v523, %v523
    %v554 = vmul.f32 %v528, %v528
    %v555 = vmul.f32 %v531, %v531
    %v556 = vmul.f32 %v536, %v536
    %v557 = vmul.f32 %v539, %v539
    %558 = vadd.xlane.f32.xlu0 %v542
    %v559 = vpop.xlane.xlu0 %558
    %560 = vadd.xlane.f32.xlu0 %v543
    %v561 = vpop.xlane.xlu0 %560
    %562 = vadd.xlane.f32.xlu0 %v544
    %v563 = vpop.xlane.xlu0 %562
    %564 = vadd.xlane.f32.xlu0 %v545
    %v565 = vpop.xlane.xlu0 %564
    %566 = vadd.xlane.f32.xlu0 %v546
    %v567 = vpop.xlane.xlu0 %566
    %568 = vadd.xlane.f32.xlu0 %v547
    %v569 = vpop.xlane.xlu0 %568
    %570 = vadd.xlane.f32.xlu0 %v548
    %v571 = vpop.xlane.xlu0 %570
    %572 = vadd.xlane.f32.xlu0 %v549
    %v573 = vpop.xlane.xlu0 %572
    %574 = vadd.xlane.f32.xlu0 %v550
    %v575 = vpop.xlane.xlu0 %574
    %576 = vadd.xlane.f32.xlu0 %v551
    %v577 = vpop.xlane.xlu0 %576
    %578 = vadd.xlane.f32.xlu0 %v552
    %v579 = vpop.xlane.xlu0 %578
    %580 = vadd.xlane.f32.xlu0 %v553
    %v581 = vpop.xlane.xlu0 %580
    %582 = vadd.xlane.f32.xlu0 %v554
    %v583 = vpop.xlane.xlu0 %582
    %584 = vadd.xlane.f32.xlu0 %v555
    %v585 = vpop.xlane.xlu0 %584
    %586 = vadd.xlane.f32.xlu0 %v556
    %v587 = vpop.xlane.xlu0 %586
    %588 = vadd.xlane.f32.xlu0 %v557
    %v589 = vpop.xlane.xlu0 %588
    %v590 = vmax.f32 %v559, 1e-24
    %v591 = vmax.f32 %v561, 1e-24
    %v592 = vmax.f32 %v563, 1e-24
    %v593 = vmax.f32 %v565, 1e-24
    %v594 = vmax.f32 %v567, 1e-24
    %v595 = vmax.f32 %v569, 1e-24
    %v596 = vmax.f32 %v571, 1e-24
    %v597 = vmax.f32 %v573, 1e-24
    %v598 = vmax.f32 %v575, 1e-24
    %v599 = vmax.f32 %v577, 1e-24
    %v600 = vmax.f32 %v579, 1e-24
    %v601 = vmax.f32 %v581, 1e-24
    %v602 = vmax.f32 %v583, 1e-24
    %v603 = vmax.f32 %v585, 1e-24
    %v604 = vmax.f32 %v587, 1e-24
    %v605 = vmax.f32 %v589, 1e-24
    %v606 = vrsqrt.pop %v590
    %v607 = vrsqrt.pop %v591
    %v608 = vrsqrt.pop %v592
    %v609 = vrsqrt.pop %v593
    %v610 = vrsqrt.pop %v594
    %v611 = vrsqrt.pop %v595
    %v612 = vrsqrt.pop %v596
    %v613 = vrsqrt.pop %v597
    %v614 = vrsqrt.pop %v598
    %v615 = vrsqrt.pop %v599
    %v616 = vrsqrt.pop %v600
    %v617 = vrsqrt.pop %v601
    %v618 = vrsqrt.pop %v602
    %v619 = vrsqrt.pop %v603
    %v620 = vrsqrt.pop %v604
    %v621 = vrsqrt.pop %v605
    %v622 = vmul.f32 %v480, %v606
    %v623 = vmul.f32 %v483, %v607
    %v624 = vmul.f32 %v488, %v608
    %v625 = vmul.f32 %v491, %v609
    %v626 = vmul.f32 %v496, %v610
    %v627 = vmul.f32 %v499, %v611
    %v628 = vmul.f32 %v504, %v612
    %v629 = vmul.f32 %v507, %v613
    %v630 = vmul.f32 %v512, %v614
    %v631 = vmul.f32 %v515, %v615
    %v632 = vmul.f32 %v520, %v616
    %v633 = vmul.f32 %v523, %v617
    %v634 = vmul.f32 %v528, %v618
    %v635 = vmul.f32 %v531, %v619
    %v636 = vmul.f32 %v536, %v620
    %v637 = vmul.f32 %v539, %v621
    %v638 = vsel %vm142, 1, 0
    %v639 = vsel %vm143, 1, 0
    %v640 = vsel %vm144, 1, 0
    %v641 = vsel %vm145, 1, 0
    %v642 = vsel %vm146, 1, 0
    %v643 = vsel %vm147, 1, 0
    %v644 = vsel %vm148, 1, 0
    %v645 = vsel %vm149, 1, 0
    %v646 = vsel %vm150, 1, 0
    %v647 = vsel %vm151, 1, 0
    %v648 = vsel %vm152, 1, 0
    %v649 = vsel %vm153, 1, 0
    %v650 = vsel %vm154, 1, 0
    %v651 = vsel %vm155, 1, 0
    %v652 = vsel %vm156, 1, 0
    %v653 = vsel %vm157, 1, 0
    %vm654 = vcmp.eq.s32.totalorder %v638, 1
    %vm655 = vcmp.eq.s32.totalorder %v639, 1
    %vm656 = vcmp.eq.s32.totalorder %v640, 1
    %vm657 = vcmp.eq.s32.totalorder %v641, 1
    %vm658 = vcmp.eq.s32.totalorder %v642, 1
    %vm659 = vcmp.eq.s32.totalorder %v643, 1
    %vm660 = vcmp.eq.s32.totalorder %v644, 1
    %vm661 = vcmp.eq.s32.totalorder %v645, 1
    %vm662 = vcmp.eq.s32.totalorder %v646, 1
    %vm663 = vcmp.eq.s32.totalorder %v647, 1
    %vm664 = vcmp.eq.s32.totalorder %v648, 1
    %vm665 = vcmp.eq.s32.totalorder %v649, 1
    %vm666 = vcmp.eq.s32.totalorder %v650, 1
    %vm667 = vcmp.eq.s32.totalorder %v651, 1
    %vm668 = vcmp.eq.s32.totalorder %v652, 1
    %vm669 = vcmp.eq.s32.totalorder %v653, 1
    %v670 = vsel %vm654, %v622, 0.0
    %v671 = vsel %vm655, %v623, 0.0
    %v672 = vsel %vm656, %v624, 0.0
    %v673 = vsel %vm657, %v625, 0.0
    %v674 = vsel %vm658, %v626, 0.0
    %v675 = vsel %vm659, %v627, 0.0
    %v676 = vsel %vm660, %v628, 0.0
    %v677 = vsel %vm661, %v629, 0.0
    %v678 = vsel %vm662, %v630, 0.0
    %v679 = vsel %vm663, %v631, 0.0
    %v680 = vsel %vm664, %v632, 0.0
    %v681 = vsel %vm665, %v633, 0.0
    %v682 = vsel %vm666, %v634, 0.0
    %v683 = vsel %vm667, %v635, 0.0
    %v684 = vsel %vm668, %v636, 0.0
    %v685 = vsel %vm669, %v637, 0.0
    %686 = vst [vmem:[#allocation13] sm:$0xff] %v670
    %687 = vst [vmem:[#allocation13 + $0x8] sm:$0xff] %v671
    %688 = vst [vmem:[#allocation13 + $0x10] sm:$0xff] %v672
    %689 = vst [vmem:[#allocation13 + $0x18] sm:$0xff] %v673
    %690 = vst [vmem:[#allocation13 + $0x20] sm:$0xff] %v674
    %691 = vst [vmem:[#allocation13 + $0x28] sm:$0xff] %v675
    %692 = vst [vmem:[#allocation13 + $0x30] sm:$0xff] %v676
    %693 = vst [vmem:[#allocation13 + $0x38] sm:$0xff] %v677
    %694 = vst [vmem:[#allocation13 + $0x40] sm:$0xff] %v678
    %695 = vst [vmem:[#allocation13 + $0x48] sm:$0xff] %v679
    %696 = vst [vmem:[#allocation13 + $0x50] sm:$0xff] %v680
    %697 = vst [vmem:[#allocation13 + $0x58] sm:$0xff] %v681
    %698 = vst [vmem:[#allocation13 + $0x60] sm:$0xff] %v682
    %699 = vst [vmem:[#allocation13 + $0x68] sm:$0xff] %v683
    %700 = vst [vmem:[#allocation13 + $0x70] sm:$0xff] %v684
    %701 = vst [vmem:[#allocation13 + $0x78] sm:$0xff] %v685
    %v702 = vmax.f32 %v480, 0.0
    %v703 = vmax.f32 %v483, 0.0
    %v704 = vmax.f32 %v488, 0.0
    %v705 = vmax.f32 %v491, 0.0
    %v706 = vmax.f32 %v496, 0.0
    %v707 = vmax.f32 %v499, 0.0
    %v708 = vmax.f32 %v504, 0.0
    %v709 = vmax.f32 %v507, 0.0
    %v710 = vmax.f32 %v512, 0.0
    %v711 = vmax.f32 %v515, 0.0
    %v712 = vmax.f32 %v520, 0.0
    %v713 = vmax.f32 %v523, 0.0
    %v714 = vmax.f32 %v528, 0.0
    %v715 = vmax.f32 %v531, 0.0
    %v716 = vmax.f32 %v536, 0.0
    %v717 = vmax.f32 %v539, 0.0
    %v718 = vsel %vm654, %v702, 0.0
    %v719 = vsel %vm655, %v703, 0.0
    %v720 = vsel %vm656, %v704, 0.0
    %v721 = vsel %vm657, %v705, 0.0
    %v722 = vsel %vm658, %v706, 0.0
    %v723 = vsel %vm659, %v707, 0.0
    %v724 = vsel %vm660, %v708, 0.0
    %v725 = vsel %vm661, %v709, 0.0
    %v726 = vsel %vm662, %v710, 0.0
    %v727 = vsel %vm663, %v711, 0.0
    %v728 = vsel %vm664, %v712, 0.0
    %v729 = vsel %vm665, %v713, 0.0
    %v730 = vsel %vm666, %v714, 0.0
    %v731 = vsel %vm667, %v715, 0.0
    %v732 = vsel %vm668, %v716, 0.0
    %v733 = vsel %vm669, %v717, 0.0
    %v734 = vpack.c.bf16 %v719, %v718
    %v735 = vpack.c.bf16 %v721, %v720
    %v736 = vpack.c.bf16 %v723, %v722
    %v737 = vpack.c.bf16 %v725, %v724
    %v738 = vpack.c.bf16 %v727, %v726
    %v739 = vpack.c.bf16 %v729, %v728
    %v740 = vpack.c.bf16 %v731, %v730
    %v741 = vpack.c.bf16 %v733, %v732
    %v750 = vunpack.c.l.b16 %v734
    %v751 = vunpack.c.h.b16 %v734
    %v752 = vunpack.c.l.b16 %v735
    %v753 = vunpack.c.h.b16 %v735
    %v754 = vunpack.c.l.b16 %v736
    %v755 = vunpack.c.h.b16 %v736
    %v756 = vunpack.c.l.b16 %v737
    %v757 = vunpack.c.h.b16 %v737
    %v758 = vunpack.c.l.b16 %v738
    %v759 = vunpack.c.h.b16 %v738
    %v760 = vunpack.c.l.b16 %v739
    %v761 = vunpack.c.h.b16 %v739
    %v762 = vunpack.c.l.b16 %v740
    %v763 = vunpack.c.h.b16 %v740
    %v764 = vunpack.c.l.b16 %v741
    %v765 = vunpack.c.h.b16 %v741
    %v766 = vpack.c.b16 %v750, %v750
    %v767 = vpack.c.b16 %v751, %v751
    %v768 = vpack.c.b16 %v752, %v752
    %v769 = vpack.c.b16 %v753, %v753
    %v770 = vpack.c.b16 %v754, %v754
    %v771 = vpack.c.b16 %v755, %v755
    %v772 = vpack.c.b16 %v756, %v756
    %v773 = vpack.c.b16 %v757, %v757
    %v774 = vpack.c.b16 %v758, %v758
    %v775 = vpack.c.b16 %v759, %v759
    %v776 = vpack.c.b16 %v760, %v760
    %v777 = vpack.c.b16 %v761, %v761
    %v778 = vpack.c.b16 %v762, %v762
    %v779 = vpack.c.b16 %v763, %v763
    %v780 = vpack.c.b16 %v764, %v764
    %v781 = vpack.c.b16 %v765, %v765
    %798 = vst [vmem:[#allocation14] sm:$0xf] %v766
    %799 = vst [vmem:[#allocation14 + $0x4] sm:$0xf] %v767
    %800 = vst [vmem:[#allocation14 + $0x8] sm:$0xf] %v768
    %801 = vst [vmem:[#allocation14 + $0xc] sm:$0xf] %v769
    %802 = vst [vmem:[#allocation14 + $0x10] sm:$0xf] %v770
    %803 = vst [vmem:[#allocation14 + $0x14] sm:$0xf] %v771
    %804 = vst [vmem:[#allocation14 + $0x18] sm:$0xf] %v772
    %805 = vst [vmem:[#allocation14 + $0x1c] sm:$0xf] %v773
    %806 = vst [vmem:[#allocation14 + $0x20] sm:$0xf] %v774
    %807 = vst [vmem:[#allocation14 + $0x24] sm:$0xf] %v775
    %808 = vst [vmem:[#allocation14 + $0x28] sm:$0xf] %v776
    %809 = vst [vmem:[#allocation14 + $0x2c] sm:$0xf] %v777
    %810 = vst [vmem:[#allocation14 + $0x30] sm:$0xf] %v778
    %811 = vst [vmem:[#allocation14 + $0x34] sm:$0xf] %v779
    %812 = vst [vmem:[#allocation14 + $0x38] sm:$0xf] %v780
    %813 = vst [vmem:[#allocation14 + $0x3c] sm:$0xf] %v781
    %v814 = vld [vmem:[#allocation11] sm:$0xf]
    %v815 = vld [vmem:[#allocation11 + $0x4] sm:$0xf]
    %v816 = vld [vmem:[#allocation11 + $0x8] sm:$0xf]
    %v817 = vld [vmem:[#allocation11 + $0xc] sm:$0xf]
    %v818 = vld [vmem:[#allocation11 + $0x10] sm:$0xf]
    %v819 = vld [vmem:[#allocation11 + $0x14] sm:$0xf]
    %v820 = vld [vmem:[#allocation11 + $0x18] sm:$0xf]
    %v821 = vld [vmem:[#allocation11 + $0x1c] sm:$0xf]
    %v822 = vld [vmem:[#allocation11 + $0x20] sm:$0xf]
    %v823 = vld [vmem:[#allocation11 + $0x24] sm:$0xf]
    %v824 = vld [vmem:[#allocation11 + $0x28] sm:$0xf]
    %v825 = vld [vmem:[#allocation11 + $0x2c] sm:$0xf]
    %v826 = vld [vmem:[#allocation11 + $0x30] sm:$0xf]
    %v827 = vld [vmem:[#allocation11 + $0x34] sm:$0xf]
    %v828 = vld [vmem:[#allocation11 + $0x38] sm:$0xf]
    %v829 = vld [vmem:[#allocation11 + $0x3c] sm:$0xf]
    %v846 = vunpack.c.l.b16 %v814
    %v847 = vunpack.c.l.b16 %v815
    %v848 = vunpack.c.l.b16 %v816
    %v849 = vunpack.c.l.b16 %v817
    %v850 = vunpack.c.l.b16 %v818
    %v851 = vunpack.c.l.b16 %v819
    %v852 = vunpack.c.l.b16 %v820
    %v853 = vunpack.c.l.b16 %v821
    %v854 = vunpack.c.l.b16 %v822
    %v855 = vunpack.c.l.b16 %v823
    %v856 = vunpack.c.l.b16 %v824
    %v857 = vunpack.c.l.b16 %v825
    %v858 = vunpack.c.l.b16 %v826
    %v859 = vunpack.c.l.b16 %v827
    %v860 = vunpack.c.l.b16 %v828
    %v861 = vunpack.c.l.b16 %v829
    %v862 = vpack.c.b16 %v847, %v846
    %v863 = vpack.c.b16 %v849, %v848
    %v864 = vpack.c.b16 %v851, %v850
    %v865 = vpack.c.b16 %v853, %v852
    %v866 = vpack.c.b16 %v855, %v854
    %v867 = vpack.c.b16 %v857, %v856
    %v868 = vpack.c.b16 %v859, %v858
    %v869 = vpack.c.b16 %v861, %v860
    %878 = vmatprep.subr.bf16.mxu0 0
    %879 = vmatpush1.bf16.msra.mxu0 %v862
    %880 = vmatprep.subr.bf16.mxu0 0
    %881 = vmatpush1.bf16.msra.mxu0 %v863
    %882 = vmatprep.subr.bf16.mxu0 0
    %883 = vmatpush1.bf16.msra.mxu0 %v864
    %884 = vmatprep.subr.bf16.mxu0 0
    %885 = vmatpush1.bf16.msra.mxu0 %v865
    %886 = vmatprep.subr.bf16.mxu0 0
    %887 = vmatpush1.bf16.msra.mxu0 %v866
    %888 = vmatprep.subr.bf16.mxu0 0
    %889 = vmatpush1.bf16.msra.mxu0 %v867
    %890 = vmatprep.subr.bf16.mxu0 0
    %891 = vmatpush1.bf16.msra.mxu0 %v868
    %892 = vmatprep.subr.bf16.mxu0 0
    %893 = vmatpush1.bf16.msra.mxu0 %v869
    %894 = vmatprep.subr.bf16.mxu0 0
    %895 = vmatpush1.bf16.msra.mxu0 0
    %896 = vmatprep.subr.bf16.mxu0 0
    %897 = vmatpush1.bf16.msra.mxu0 0
    %898 = vmatprep.subr.bf16.mxu0 0
    %899 = vmatpush1.bf16.msra.mxu0 0
    %900 = vmatprep.subr.bf16.mxu0 0
    %901 = vmatpush1.bf16.msra.mxu0 0
    %902 = vmatprep.subr.bf16.mxu0 0
    %903 = vmatpush1.bf16.msra.mxu0 0
    %904 = vmatprep.subr.bf16.mxu0 0
    %905 = vmatpush1.bf16.msra.mxu0 0
    %906 = vmatprep.subr.bf16.mxu0 0
    %907 = vmatpush1.bf16.msra.mxu0 0
    %908 = vmatprep.subr.bf16.mxu0 0
    %909 = vmatpush1.bf16.msra.mxu0 0
    %910 = vmatprep.mubr.bf16.mxu0 0
    %911 = vmatmul.mubr.bf16.gmra.mrb[0].mxu0 %v734
    %v912 = vpop.f32.mrb[0].mxu0
    %v913 = vadd.f32 0.0, %v912
    %v914 = vpop.f32.mrb[0].mxu0
    %v915 = vpop.f32.mrb[0].mxu0
    %v916 = vadd.f32 0.0, %v915
    %v917 = vpop.f32.mrb[0].mxu0
    %918 = vmatprep.mubr.bf16.mxu0 0
    %919 = vmatmul.mubr.bf16.gmra.mrb[0].mxu0 %v735
    %v920 = vpop.f32.mrb[0].mxu0
    %v921 = vadd.f32 0.0, %v920
    %v922 = vpop.f32.mrb[0].mxu0
    %v923 = vpop.f32.mrb[0].mxu0
    %v924 = vadd.f32 0.0, %v923
    %v925 = vpop.f32.mrb[0].mxu0
    %926 = vmatprep.mubr.bf16.mxu0 0
    %927 = vmatmul.mubr.bf16.gmra.mrb[0].mxu0 %v736
    %v928 = vpop.f32.mrb[0].mxu0
    %v929 = vadd.f32 0.0, %v928
    %v930 = vpop.f32.mrb[0].mxu0
    %v931 = vpop.f32.mrb[0].mxu0
    %v932 = vadd.f32 0.0, %v931
    %v933 = vpop.f32.mrb[0].mxu0
    %934 = vmatprep.mubr.bf16.mxu0 0
    %935 = vmatmul.mubr.bf16.gmra.mrb[0].mxu0 %v737
    %v936 = vpop.f32.mrb[0].mxu0
    %v937 = vadd.f32 0.0, %v936
    %v938 = vpop.f32.mrb[0].mxu0
    %v939 = vpop.f32.mrb[0].mxu0
    %v940 = vadd.f32 0.0, %v939
    %v941 = vpop.f32.mrb[0].mxu0
    %942 = vmatprep.mubr.bf16.mxu0 0
    %943 = vmatmul.mubr.bf16.gmra.mrb[0].mxu0 %v738
    %v944 = vpop.f32.mrb[0].mxu0
    %v945 = vadd.f32 0.0, %v944
    %v946 = vpop.f32.mrb[0].mxu0
    %v947 = vpop.f32.mrb[0].mxu0
    %v948 = vadd.f32 0.0, %v947
    %v949 = vpop.f32.mrb[0].mxu0
    %950 = vmatprep.mubr.bf16.mxu0 0
    %951 = vmatmul.mubr.bf16.gmra.mrb[0].mxu0 %v739
    %v952 = vpop.f32.mrb[0].mxu0
    %v953 = vadd.f32 0.0, %v952
    %v954 = vpop.f32.mrb[0].mxu0
    %v955 = vpop.f32.mrb[0].mxu0
    %v956 = vadd.f32 0.0, %v955
    %v957 = vpop.f32.mrb[0].mxu0
    %958 = vmatprep.mubr.bf16.mxu0 0
    %959 = vmatmul.mubr.bf16.gmra.mrb[0].mxu0 %v740
    %v960 = vpop.f32.mrb[0].mxu0
    %v961 = vadd.f32 0.0, %v960
    %v962 = vpop.f32.mrb[0].mxu0
    %v963 = vpop.f32.mrb[0].mxu0
    %v964 = vadd.f32 0.0, %v963
    %v965 = vpop.f32.mrb[0].mxu0
    %966 = vmatprep.mubr.bf16.mxu0 0
    %967 = vmatmul.mubr.bf16.gmra.mrb[0].mxu0 %v741
    %v968 = vpop.f32.mrb[0].mxu0
    %v969 = vadd.f32 0.0, %v968
    %v970 = vpop.f32.mrb[0].mxu0
    %v971 = vpop.f32.mrb[0].mxu0
    %v972 = vadd.f32 0.0, %v971
    %v973 = vpop.f32.mrb[0].mxu0
    %974 = vdwg.mxu0
    %v975 = vpack.c.bf16 %v916, %v913
    %v976 = vpack.c.bf16 %v924, %v921
    %v977 = vpack.c.bf16 %v932, %v929
    %v978 = vpack.c.bf16 %v940, %v937
    %v979 = vpack.c.bf16 %v948, %v945
    %v980 = vpack.c.bf16 %v956, %v953
    %v981 = vpack.c.bf16 %v964, %v961
    %v982 = vpack.c.bf16 %v972, %v969
    %v991 = vunpack.c.l.b16 %v975
    %v992 = vunpack.c.h.b16 %v975
    %v993 = vunpack.c.l.b16 %v976
    %v994 = vunpack.c.h.b16 %v976
    %v995 = vunpack.c.l.b16 %v977
    %v996 = vunpack.c.h.b16 %v977
    %v997 = vunpack.c.l.b16 %v978
    %v998 = vunpack.c.h.b16 %v978
    %v999 = vunpack.c.l.b16 %v979
    %v1000 = vunpack.c.h.b16 %v979
    %v1001 = vunpack.c.l.b16 %v980
    %v1002 = vunpack.c.h.b16 %v980
    %v1003 = vunpack.c.l.b16 %v981
    %v1004 = vunpack.c.h.b16 %v981
    %v1005 = vunpack.c.l.b16 %v982
    %v1006 = vunpack.c.h.b16 %v982
    %v1007 = vpack.c.b16 %v991, %v991
    %v1008 = vpack.c.b16 %v992, %v992
    %v1009 = vpack.c.b16 %v993, %v993
    %v1010 = vpack.c.b16 %v994, %v994
    %v1011 = vpack.c.b16 %v995, %v995
    %v1012 = vpack.c.b16 %v996, %v996
    %v1013 = vpack.c.b16 %v997, %v997
    %v1014 = vpack.c.b16 %v998, %v998
    %v1015 = vpack.c.b16 %v999, %v999
    %v1016 = vpack.c.b16 %v1000, %v1000
    %v1017 = vpack.c.b16 %v1001, %v1001
    %v1018 = vpack.c.b16 %v1002, %v1002
    %v1019 = vpack.c.b16 %v1003, %v1003
    %v1020 = vpack.c.b16 %v1004, %v1004
    %v1021 = vpack.c.b16 %v1005, %v1005
    %v1022 = vpack.c.b16 %v1006, %v1006
    %1039 = vst [vmem:[#allocation16] sm:$0xf] %v1007
    %1040 = vst [vmem:[#allocation16 + $0x4] sm:$0xf] %v1008
    %1041 = vst [vmem:[#allocation16 + $0x8] sm:$0xf] %v1009
    %1042 = vst [vmem:[#allocation16 + $0xc] sm:$0xf] %v1010
    %1043 = vst [vmem:[#allocation16 + $0x10] sm:$0xf] %v1011
    %1044 = vst [vmem:[#allocation16 + $0x14] sm:$0xf] %v1012
    %1045 = vst [vmem:[#allocation16 + $0x18] sm:$0xf] %v1013
    %1046 = vst [vmem:[#allocation16 + $0x1c] sm:$0xf] %v1014
    %1047 = vst [vmem:[#allocation16 + $0x20] sm:$0xf] %v1015
    %1048 = vst [vmem:[#allocation16 + $0x24] sm:$0xf] %v1016
    %1049 = vst [vmem:[#allocation16 + $0x28] sm:$0xf] %v1017
    %1050 = vst [vmem:[#allocation16 + $0x2c] sm:$0xf] %v1018
    %1051 = vst [vmem:[#allocation16 + $0x30] sm:$0xf] %v1019
    %1052 = vst [vmem:[#allocation16 + $0x34] sm:$0xf] %v1020
    %1053 = vst [vmem:[#allocation16 + $0x38] sm:$0xf] %v1021
    %1054 = vst [vmem:[#allocation16 + $0x3c] sm:$0xf] %v1022
    // Predicated region
    $region50: #{tpu_custom_call.1} parent=1 // pred_check
      _
    $region51: #{tpu_custom_call.1} parent=1 // pred_check_branch
      %1056 = sbr.rel (0) target = $region53
    $region52: #{tpu_custom_call.1} parent=1 // pred_region
      %s1058 = ssub.s32 2048, 2048
      %1059 = vsyncadd [#allocation4], %s1058
      %s1060 = sshll.u32 [#allocation13], 4
      %s1061 = int_to_ptr.vmem [resolvable:$true] %s1060
      %1066 = dma.vmem_to_hbm [thread:$0]  %s1061, 2048, %s6, [#allocation4], 128, 128, 8
    $region53: #{tpu_custom_call.1} parent=1 // pred_fallthru
      _
    // Predicated region
    $region54: #{tpu_custom_call.1} parent=1 // pred_check
      _
    $region55: #{tpu_custom_call.1} parent=1 // pred_check_branch
      %1068 = sbr.rel (0) target = $region57
    $region56: #{tpu_custom_call.1} parent=1 // pred_region
      %s1070 = ssub.s32 1024, 1024
      %1071 = vsyncadd [#allocation15], %s1070
      %s1072 = sshll.u32 [#allocation14], 4
      %s1073 = int_to_ptr.vmem [resolvable:$true] %s1072
      %1078 = dma.vmem_to_hbm [thread:$0]  %s1073, 1024, %s7, [#allocation15], 64, 64, 4
    $region57: #{tpu_custom_call.1} parent=1 // pred_fallthru
      _
    // Predicated region
    $region58: #{tpu_custom_call.1} parent=1 // pred_check
      _
    $region59: #{tpu_custom_call.1} parent=1 // pred_check_branch
      %1080 = sbr.rel (0) target = $region61
    $region60: #{tpu_custom_call.1} parent=1 // pred_region
      %s1082 = ssub.s32 1024, 1024
      %1083 = vsyncadd [#allocation15], %s1082
      %s1084 = sshll.u32 [#allocation16], 4
      %s1085 = int_to_ptr.vmem [resolvable:$true] %s1084
      %1090 = dma.vmem_to_hbm [thread:$0]  %s1085, 1024, %s8, [#allocation15], 64, 64, 4
    $region61: #{tpu_custom_call.1} parent=1 // pred_fallthru
      _
    // Predicated region
    $region62: #{tpu_custom_call.1} parent=1 // pred_check
      _
    $region63: #{tpu_custom_call.1} parent=1 // pred_check_branch
      %1092 = sbr.rel (0) target = $region65
    $region64: #{tpu_custom_call.1} parent=1 // pred_region
      %1093 = dma.done [#allocation4], 2048
    $region65: #{tpu_custom_call.1} parent=1 // pred_fallthru
      _
    // Predicated region
    $region66: #{tpu_custom_call.1} parent=1 // pred_check
      _
    $region67: #{tpu_custom_call.1} parent=1 // pred_check_branch
      %1095 = sbr.rel (0) target = $region69
    $region68: #{tpu_custom_call.1} parent=1 // pred_region
      %1096 = dma.done [#allocation15], 1024
    $region69: #{tpu_custom_call.1} parent=1 // pred_fallthru
      _
    // Predicated region
    $region70: #{tpu_custom_call.1} parent=1 // pred_check
      _
    $region71: #{tpu_custom_call.1} parent=1 // pred_check_branch
      %1098 = sbr.rel (0) target = $region73
    $region72: #{tpu_custom_call.1} parent=1 // pred_region
      %1099 = dma.done [#allocation15], 1024
    $region73: #{tpu_custom_call.1} parent=1 // pred_fallthru
      _
    %1100 = vsyncpa [#allocation3], 1
    %1101 = vsyncpa [#allocation6], 1
    %1102 = vsyncpa [#allocation9], 1
    %1103 = vsyncpa [#allocation12], 1
    %1104 = vsyncpa [#allocation4], 1
    %1105 = vsyncpa [#allocation15], 1

</llo_original>
